<compile_context>
chip_gen: v7x
topology: tpu7x:2x2x1
jax: 0.10.0
libtpu: 0.0.40
codegen_flags: <defaults>
</compile_context>

<pallas_src>
import jax
import jax.numpy as jnp
from jax.experimental import pallas as pl
from jax.experimental.pallas import tpu as pltpu


# --------------------------------------------------------------------------
# Fused kernel
# --------------------------------------------------------------------------
def _fused_resblock_kernel(x_ref, w1_ref, b1_ref, w2_ref, b2_ref, out_ref,
                           xpad_ref, y1pad_ref):
    """One batch element per grid step; everything stays in VMEM.

    x_ref   : (1, H, W*C)   input rows, flattened w-major / c-minor
    w*_ref  : (3, W*C, W*C) banded weight matrices (one per vertical tap)
    b*_ref  : (1, W*C)      bias broadcast over the flattened W*C axis
    out_ref : (1, H, W*C)
    *_pad   : (H+2, W*C)    VMEM scratch with zero halo rows (in-kernel pad)
    """
    H = x_ref.shape[1]
    N = x_ref.shape[2]

    x = x_ref[0]                                   # (H, N) original rows
    zero_row = jnp.zeros((1, N), jnp.float32)

    # ---- stage 1: relu1 -> conv1 + b1 --------------------------------------
    # relu(pad(x)) == pad(relu(x)) for zero padding.
    xpad_ref[pl.ds(0, 1), :] = zero_row            # top halo row
    xpad_ref[pl.ds(H + 1, 1), :] = zero_row        # bottom halo row
    xpad_ref[pl.ds(1, H), :] = jnp.maximum(x, 0.0)

    acc1 = jnp.zeros((H, N), jnp.float32)
    for dy in range(3):                            # 3 vertical taps, unrolled
        acc1 = acc1 + jnp.dot(xpad_ref[pl.ds(dy, H), :], w1_ref[dy],
                              preferred_element_type=jnp.float32)
    y1 = acc1 + b1_ref[...]

    # ---- stage 2: relu2 -> conv2 + b2 + residual ---------------------------
    y1pad_ref[pl.ds(0, 1), :] = zero_row
    y1pad_ref[pl.ds(H + 1, 1), :] = zero_row
    y1pad_ref[pl.ds(1, H), :] = jnp.maximum(y1, 0.0)

    acc2 = jnp.zeros((H, N), jnp.float32)
    for dy in range(3):
        acc2 = acc2 + jnp.dot(y1pad_ref[pl.ds(dy, H), :], w2_ref[dy],
                              preferred_element_type=jnp.float32)

    out_ref[0] = (acc2 + b2_ref[...] + x).astype(out_ref.dtype)


# --------------------------------------------------------------------------
# Wrapper-side parameter packing
# --------------------------------------------------------------------------
def _banded_weight(w_oihw, W):
    """PyTorch conv weight (Cout, Cin, 3, 3) -> (3, W*Cin, W*Cout) bands.

    band[dy] realizes, for vertical tap dy, the horizontal 3-tap convolution
    (including W-edge zero padding) on a row flattened as (W*Cin,) -> (W*Cout,)
    via a single matmul.  The dx shift and the edge clipping are encoded with
    offset identity matrices, so no zero padding along W is needed at runtime.
    """
    Cout, Cin, KH, KW = w_oihw.shape
    w_t = jnp.transpose(w_oihw, (2, 3, 1, 0)).astype(jnp.float32)  # (KH,KW,Cin,Cout)
    bands = []
    for dy in range(KH):
        acc = jnp.zeros((W * Cin, W * Cout), jnp.float32)
        for dx in range(KW):
            shift = jnp.eye(W, W, k=1 - dx, dtype=jnp.float32)
            acc = acc + jnp.kron(shift, w_t[dy, dx])
        bands.append(acc)
    return jnp.stack(bands, axis=0)


def init_resblock_params(key, num_channels):
    """Deterministic synthetic parameters, PyTorch Conv2d layouts."""
    k1, k2, k3, k4 = jax.random.split(key, 4)
    w1 = jax.random.normal(k1, (num_channels, num_channels, 3, 3), jnp.float32) * 0.1
    b1 = jax.random.normal(k2, (num_channels,), jnp.float32) * 0.1
    w2 = jax.random.normal(k3, (num_channels, num_channels, 3, 3), jnp.float32) * 0.1
    b2 = jax.random.normal(k4, (num_channels,), jnp.float32) * 0.1
    return {"w1": w1, "b1": b1, "w2": w2, "b2": b2}


# --------------------------------------------------------------------------
# Forward pass
# --------------------------------------------------------------------------
@jax.jit
def resblock_forward(x_nchw, params):
    """ResBlock.forward (batch_norm=False), input/output in NCHW."""
    B, C, H, W = x_nchw.shape
    N = W * C

    # Single layout pass: NCHW -> NHWC -> (B, H, W*C) lane-dense rows.
    x = jnp.transpose(x_nchw, (0, 2, 3, 1)).astype(jnp.float32).reshape(B, H, N)

    w1b = _banded_weight(params["w1"], W)                 # (3, N, N)
    w2b = _banded_weight(params["w2"], W)                 # (3, N, N)
    b1r = jnp.tile(params["b1"].astype(jnp.float32), W).reshape(1, N)
    b2r = jnp.tile(params["b2"].astype(jnp.float32), W).reshape(1, N)

    flops = B * 2 * 3 * 2 * H * N * N                     # 2 convs x 3 band matmuls
    bytes_accessed = (2 * B * H * N + 2 * 3 * N * N + 2 * N) * 4

    y = pl.pallas_call(
        _fused_resblock_kernel,
        out_shape=jax.ShapeDtypeStruct((B, H, N), jnp.float32),
        grid_spec=pltpu.PrefetchScalarGridSpec(
            num_scalar_prefetch=0,
            grid=(B,),
            in_specs=[
                pl.BlockSpec((1, H, N), lambda b: (b, 0, 0)),   # activations
                pl.BlockSpec((3, N, N), lambda b: (0, 0, 0)),   # w1 (resident)
                pl.BlockSpec((1, N), lambda b: (0, 0)),         # b1 (resident)
                pl.BlockSpec((3, N, N), lambda b: (0, 0, 0)),   # w2 (resident)
                pl.BlockSpec((1, N), lambda b: (0, 0)),         # b2 (resident)
            ],
            out_specs=pl.BlockSpec((1, H, N), lambda b: (b, 0, 0)),
            scratch_shapes=[
                pltpu.VMEM((H + 2, N), jnp.float32),            # padded relu(x)
                pltpu.VMEM((H + 2, N), jnp.float32),            # padded relu(y1)
            ],
        ),
        compiler_params=pltpu.CompilerParams(
            dimension_semantics=("parallel",),                  # 2 TCs on v7x
        ),
        cost_estimate=pl.CostEstimate(
            flops=flops, transcendentals=0, bytes_accessed=bytes_accessed),
    )(x, w1b, b1r, w2b, b2r)

    return jnp.transpose(y.reshape(B, H, W, C), (0, 3, 1, 2))   # -> NCHW


# --------------------------------------------------------------------------
# Pure-JAX reference (matches the PyTorch module)
# --------------------------------------------------------------------------
def ref_resblock(x_nchw, params):
    def conv(x_nhwc, w_oihw, b):
        w_hwio = jnp.transpose(w_oihw, (2, 3, 1, 0))
        y = jax.lax.conv_general_dilated(
            x_nhwc, w_hwio, window_strides=(1, 1), padding=((1, 1), (1, 1)),
            dimension_numbers=("NHWC", "HWIO", "NHWC"))
        return y + b

    x = jnp.transpose(x_nchw, (0, 2, 3, 1)).astype(jnp.float32)
    orig = x
    x = conv(jnp.maximum(x, 0.0), params["w1"], params["b1"])
    x = conv(jnp.maximum(x, 0.0), params["w2"], params["b2"])
    return jnp.transpose(x + orig, (0, 3, 1, 2))


if __name__ == "__main__":
    key = jax.random.PRNGKey(0)
    kx, kp = jax.random.split(key)

    B, C, H, W = 2, 4, 16, 16  # NCHW, matching nn.Conv2d input convention
    x = jax.random.normal(kx, (B, C, H, W), jnp.float32)
    params = init_resblock_params(kp, C)

    y = resblock_forward(x, params)
    jax.block_until_ready(y)

    y_ref = ref_resblock(x, params)
    assert y.shape == (B, C, H, W), y.shape
    assert jnp.allclose(y, y_ref, atol=1e-4, rtol=1e-4), (
        float(jnp.max(jnp.abs(y - y_ref))))

    print("KERNEL_OK")
</pallas_src>

<mosaic_0001>
module attributes {stable_mosaic.version = 11 : i64} {
  func.func @_fused_resblock_kernel(%arg0: i32, %arg1: memref<1x16x64xf32, #tpu.memory_space<vmem>>, %arg2: memref<3x64x64xf32, #tpu.memory_space<vmem>>, %arg3: memref<1x64xf32, #tpu.memory_space<vmem>>, %arg4: memref<3x64x64xf32, #tpu.memory_space<vmem>>, %arg5: memref<1x64xf32, #tpu.memory_space<vmem>>, %arg6: memref<1x16x64xf32, #tpu.memory_space<vmem>>, %arg7: memref<18x64xf32, #tpu.memory_space<vmem>>, %arg8: memref<18x64xf32, #tpu.memory_space<vmem>>) attributes {dimension_semantics = [#tpu.dimension_semantics<parallel>], iteration_bounds = array<i64: 2>, scalar_prefetch = 0 : i64, scratch_operands = 2 : i64, tpu.core_type = #tpu.core_type<tc>, window_params = [{transform_indices = @transform_0, window_bounds = array<i64: 1, 16, 64>}, {pipeline_mode = #tpu.pipeline_mode<synchronous>, transform_indices = @transform_1, window_bounds = array<i64: 3, 64, 64>}, {pipeline_mode = #tpu.pipeline_mode<synchronous>, transform_indices = @transform_2, window_bounds = array<i64: 1, 64>}, {pipeline_mode = #tpu.pipeline_mode<synchronous>, transform_indices = @transform_3, window_bounds = array<i64: 3, 64, 64>}, {pipeline_mode = #tpu.pipeline_mode<synchronous>, transform_indices = @transform_4, window_bounds = array<i64: 1, 64>}, {transform_indices = @transform_5, window_bounds = array<i64: 1, 16, 64>}]} {
    %c0 = arith.constant 0 : index
    %c0_0 = arith.constant 0 : index
    %c0_1 = arith.constant 0 : index
    %0 = vector.load %arg1[%c0, %c0_0, %c0_1] : memref<1x16x64xf32, #tpu.memory_space<vmem>>, vector<1x16x64xf32>
    %1 = vector.shape_cast %0 : vector<1x16x64xf32> to vector<16x64xf32>
    %cst = arith.constant 0.000000e+00 : f32
    %2 = vector.broadcast %cst : f32 to vector<1x64xf32>
    %c0_2 = arith.constant 0 : index
    %c0_3 = arith.constant 0 : index
    %3 = vector.load %arg7[%c0_2, %c0_3] : memref<18x64xf32, #tpu.memory_space<vmem>>, vector<1x64xf32>
    tpu.vector_store %arg7[%c0_2, %c0_3], %2 {strides = array<i32>} : memref<18x64xf32, #tpu.memory_space<vmem>>, vector<1x64xf32>,
    %c17 = arith.constant 17 : index
    %c0_4 = arith.constant 0 : index
    %4 = vector.load %arg7[%c17, %c0_4] : memref<18x64xf32, #tpu.memory_space<vmem>>, vector<1x64xf32>
    tpu.vector_store %arg7[%c17, %c0_4], %2 {strides = array<i32>} : memref<18x64xf32, #tpu.memory_space<vmem>>, vector<1x64xf32>,
    %cst_5 = arith.constant 0.000000e+00 : f32
    %5 = vector.broadcast %cst_5 : f32 to vector<16x64xf32>
    %6 = arith.maximumf %1, %5 : vector<16x64xf32>
    %c1 = arith.constant 1 : index
    %c0_6 = arith.constant 0 : index
    %7 = vector.load %arg7[%c1, %c0_6] : memref<18x64xf32, #tpu.memory_space<vmem>>, vector<16x64xf32>
    tpu.vector_store %arg7[%c1, %c0_6], %6 {strides = array<i32>} : memref<18x64xf32, #tpu.memory_space<vmem>>, vector<16x64xf32>,
    %cst_7 = arith.constant 0.000000e+00 : f32
    %8 = vector.broadcast %cst_7 : f32 to vector<16x64xf32>
    %c0_8 = arith.constant 0 : index
    %c0_9 = arith.constant 0 : index
    %9 = vector.load %arg7[%c0_8, %c0_9] : memref<18x64xf32, #tpu.memory_space<vmem>>, vector<16x64xf32>
    %c0_10 = arith.constant 0 : index
    %c0_11 = arith.constant 0 : index
    %c0_12 = arith.constant 0 : index
    %10 = vector.load %arg2[%c0_10, %c0_11, %c0_12] : memref<3x64x64xf32, #tpu.memory_space<vmem>>, vector<1x64x64xf32>
    %11 = vector.shape_cast %10 : vector<1x64x64xf32> to vector<64x64xf32>
    %cst_13 = arith.constant dense<0.000000e+00> : vector<16x64xf32>
    %12 = tpu.matmul %9, %11, %cst_13 {dimension_numbers = #tpu.dot_dimension_numbers<[1], [0], [0], [1], [0, 0, 1, 1], [], []>} : vector<16x64xf32>, vector<64x64xf32>, vector<16x64xf32> -> vector<16x64xf32>
    %13 = arith.addf %8, %12 : vector<16x64xf32>
    %c1_14 = arith.constant 1 : index
    %c0_15 = arith.constant 0 : index
    %14 = vector.load %arg7[%c1_14, %c0_15] : memref<18x64xf32, #tpu.memory_space<vmem>>, vector<16x64xf32>
    %c1_16 = arith.constant 1 : index
    %c0_17 = arith.constant 0 : index
    %c0_18 = arith.constant 0 : index
    %15 = vector.load %arg2[%c1_16, %c0_17, %c0_18] : memref<3x64x64xf32, #tpu.memory_space<vmem>>, vector<1x64x64xf32>
    %16 = vector.shape_cast %15 : vector<1x64x64xf32> to vector<64x64xf32>
    %cst_19 = arith.constant dense<0.000000e+00> : vector<16x64xf32>
    %17 = tpu.matmul %14, %16, %cst_19 {dimension_numbers = #tpu.dot_dimension_numbers<[1], [0], [0], [1], [0, 0, 1, 1], [], []>} : vector<16x64xf32>, vector<64x64xf32>, vector<16x64xf32> -> vector<16x64xf32>
    %18 = arith.addf %13, %17 : vector<16x64xf32>
    %c2 = arith.constant 2 : index
    %c0_20 = arith.constant 0 : index
    %19 = vector.load %arg7[%c2, %c0_20] : memref<18x64xf32, #tpu.memory_space<vmem>>, vector<16x64xf32>
    %c2_21 = arith.constant 2 : index
    %c0_22 = arith.constant 0 : index
    %c0_23 = arith.constant 0 : index
    %20 = vector.load %arg2[%c2_21, %c0_22, %c0_23] : memref<3x64x64xf32, #tpu.memory_space<vmem>>, vector<1x64x64xf32>
    %21 = vector.shape_cast %20 : vector<1x64x64xf32> to vector<64x64xf32>
    %cst_24 = arith.constant dense<0.000000e+00> : vector<16x64xf32>
    %22 = tpu.matmul %19, %21, %cst_24 {dimension_numbers = #tpu.dot_dimension_numbers<[1], [0], [0], [1], [0, 0, 1, 1], [], []>} : vector<16x64xf32>, vector<64x64xf32>, vector<16x64xf32> -> vector<16x64xf32>
    %23 = arith.addf %18, %22 : vector<16x64xf32>
    %c0_25 = arith.constant 0 : index
    %c0_26 = arith.constant 0 : index
    %24 = vector.load %arg3[%c0_25, %c0_26] : memref<1x64xf32, #tpu.memory_space<vmem>>, vector<1x64xf32>
    %25 = vector.broadcast %24 : vector<1x64xf32> to vector<16x64xf32>
    %26 = arith.addf %23, %25 : vector<16x64xf32>
    %c0_27 = arith.constant 0 : index
    %c0_28 = arith.constant 0 : index
    %27 = vector.load %arg8[%c0_27, %c0_28] : memref<18x64xf32, #tpu.memory_space<vmem>>, vector<1x64xf32>
    tpu.vector_store %arg8[%c0_27, %c0_28], %2 {strides = array<i32>} : memref<18x64xf32, #tpu.memory_space<vmem>>, vector<1x64xf32>,
    %c17_29 = arith.constant 17 : index
    %c0_30 = arith.constant 0 : index
    %28 = vector.load %arg8[%c17_29, %c0_30] : memref<18x64xf32, #tpu.memory_space<vmem>>, vector<1x64xf32>
    tpu.vector_store %arg8[%c17_29, %c0_30], %2 {strides = array<i32>} : memref<18x64xf32, #tpu.memory_space<vmem>>, vector<1x64xf32>,
    %cst_31 = arith.constant 0.000000e+00 : f32
    %29 = vector.broadcast %cst_31 : f32 to vector<16x64xf32>
    %30 = arith.maximumf %26, %29 : vector<16x64xf32>
    %c1_32 = arith.constant 1 : index
    %c0_33 = arith.constant 0 : index
    %31 = vector.load %arg8[%c1_32, %c0_33] : memref<18x64xf32, #tpu.memory_space<vmem>>, vector<16x64xf32>
    tpu.vector_store %arg8[%c1_32, %c0_33], %30 {strides = array<i32>} : memref<18x64xf32, #tpu.memory_space<vmem>>, vector<16x64xf32>,
    %cst_34 = arith.constant 0.000000e+00 : f32
    %32 = vector.broadcast %cst_34 : f32 to vector<16x64xf32>
    %c0_35 = arith.constant 0 : index
    %c0_36 = arith.constant 0 : index
    %33 = vector.load %arg8[%c0_35, %c0_36] : memref<18x64xf32, #tpu.memory_space<vmem>>, vector<16x64xf32>
    %c0_37 = arith.constant 0 : index
    %c0_38 = arith.constant 0 : index
    %c0_39 = arith.constant 0 : index
    %34 = vector.load %arg4[%c0_37, %c0_38, %c0_39] : memref<3x64x64xf32, #tpu.memory_space<vmem>>, vector<1x64x64xf32>
    %35 = vector.shape_cast %34 : vector<1x64x64xf32> to vector<64x64xf32>
    %cst_40 = arith.constant dense<0.000000e+00> : vector<16x64xf32>
    %36 = tpu.matmul %33, %35, %cst_40 {dimension_numbers = #tpu.dot_dimension_numbers<[1], [0], [0], [1], [0, 0, 1, 1], [], []>} : vector<16x64xf32>, vector<64x64xf32>, vector<16x64xf32> -> vector<16x64xf32>
    %37 = arith.addf %32, %36 : vector<16x64xf32>
    %c1_41 = arith.constant 1 : index
    %c0_42 = arith.constant 0 : index
    %38 = vector.load %arg8[%c1_41, %c0_42] : memref<18x64xf32, #tpu.memory_space<vmem>>, vector<16x64xf32>
    %c1_43 = arith.constant 1 : index
    %c0_44 = arith.constant 0 : index
    %c0_45 = arith.constant 0 : index
    %39 = vector.load %arg4[%c1_43, %c0_44, %c0_45] : memref<3x64x64xf32, #tpu.memory_space<vmem>>, vector<1x64x64xf32>
    %40 = vector.shape_cast %39 : vector<1x64x64xf32> to vector<64x64xf32>
    %cst_46 = arith.constant dense<0.000000e+00> : vector<16x64xf32>
    %41 = tpu.matmul %38, %40, %cst_46 {dimension_numbers = #tpu.dot_dimension_numbers<[1], [0], [0], [1], [0, 0, 1, 1], [], []>} : vector<16x64xf32>, vector<64x64xf32>, vector<16x64xf32> -> vector<16x64xf32>
    %42 = arith.addf %37, %41 : vector<16x64xf32>
    %c2_47 = arith.constant 2 : index
    %c0_48 = arith.constant 0 : index
    %43 = vector.load %arg8[%c2_47, %c0_48] : memref<18x64xf32, #tpu.memory_space<vmem>>, vector<16x64xf32>
    %c2_49 = arith.constant 2 : index
    %c0_50 = arith.constant 0 : index
    %c0_51 = arith.constant 0 : index
    %44 = vector.load %arg4[%c2_49, %c0_50, %c0_51] : memref<3x64x64xf32, #tpu.memory_space<vmem>>, vector<1x64x64xf32>
    %45 = vector.shape_cast %44 : vector<1x64x64xf32> to vector<64x64xf32>
    %cst_52 = arith.constant dense<0.000000e+00> : vector<16x64xf32>
    %46 = tpu.matmul %43, %45, %cst_52 {dimension_numbers = #tpu.dot_dimension_numbers<[1], [0], [0], [1], [0, 0, 1, 1], [], []>} : vector<16x64xf32>, vector<64x64xf32>, vector<16x64xf32> -> vector<16x64xf32>
    %47 = arith.addf %42, %46 : vector<16x64xf32>
    %c0_53 = arith.constant 0 : index
    %c0_54 = arith.constant 0 : index
    %48 = vector.load %arg5[%c0_53, %c0_54] : memref<1x64xf32, #tpu.memory_space<vmem>>, vector<1x64xf32>
    %49 = vector.broadcast %48 : vector<1x64xf32> to vector<16x64xf32>
    %50 = arith.addf %47, %49 : vector<16x64xf32>
    %51 = arith.addf %50, %1 : vector<16x64xf32>
    %c0_55 = arith.constant 0 : index
    %c0_56 = arith.constant 0 : index
    %c0_57 = arith.constant 0 : index
    %52 = vector.load %arg6[%c0_55, %c0_56, %c0_57] : memref<1x16x64xf32, #tpu.memory_space<vmem>>, vector<1x16x64xf32>
    %53 = vector.shape_cast %52 : vector<1x16x64xf32> to vector<16x64xf32>
    %54 = vector.shape_cast %51 : vector<16x64xf32> to vector<1x16x64xf32>
    tpu.vector_store %arg6[%c0_55, %c0_56, %c0_57], %54 {strides = array<i32>} : memref<1x16x64xf32, #tpu.memory_space<vmem>>, vector<1x16x64xf32>,
    return
  }
  func.func @transform_0(%arg0: i32) -> (i32, i32, i32) {
    %c0_i32 = arith.constant 0 : i32
    %c0_i32_0 = arith.constant 0 : i32
    %c0_i32_1 = arith.constant 0 : i32
    return %arg0, %c0_i32, %c0_i32_0 : i32, i32, i32
  }
  func.func @transform_1(%arg0: i32) -> (i32, i32, i32) {
    %c0_i32 = arith.constant 0 : i32
    %c0_i32_0 = arith.constant 0 : i32
    %c0_i32_1 = arith.constant 0 : i32
    %c0_i32_2 = arith.constant 0 : i32
    return %c0_i32, %c0_i32_0, %c0_i32_1 : i32, i32, i32
  }
  func.func @transform_2(%arg0: i32) -> (i32, i32) {
    %c0_i32 = arith.constant 0 : i32
    %c0_i32_0 = arith.constant 0 : i32
    %c0_i32_1 = arith.constant 0 : i32
    return %c0_i32, %c0_i32_0 : i32, i32
  }
  func.func @transform_3(%arg0: i32) -> (i32, i32, i32) {
    %c0_i32 = arith.constant 0 : i32
    %c0_i32_0 = arith.constant 0 : i32
    %c0_i32_1 = arith.constant 0 : i32
    %c0_i32_2 = arith.constant 0 : i32
    return %c0_i32, %c0_i32_0, %c0_i32_1 : i32, i32, i32
  }
  func.func @transform_4(%arg0: i32) -> (i32, i32) {
    %c0_i32 = arith.constant 0 : i32
    %c0_i32_0 = arith.constant 0 : i32
    %c0_i32_1 = arith.constant 0 : i32
    return %c0_i32, %c0_i32_0 : i32, i32
  }
  func.func @transform_5(%arg0: i32) -> (i32, i32, i32) {
    %c0_i32 = arith.constant 0 : i32
    %c0_i32_0 = arith.constant 0 : i32
    %c0_i32_1 = arith.constant 0 : i32
    return %arg0, %c0_i32, %c0_i32_0 : i32, i32, i32
  }
}

</mosaic_0001>

<llo_original>
// kernel: tile.13
$region0: #{tile.13}
  #allocation0 [shape = 's32[1]{0}', space=sflag, size = 0x4, scoped, tag = 'scoped memory for tile.13']
  %s0 = inlined_call_operand.vmem [shape: f32[4], index: 0, kind: input, shape index: {}]
  %s1 = inlined_call_operand.vmem [shape: f32[16,4], index: 1, kind: output, shape index: {}]
  // Predicated region
  $region2: #{tile.13} parent=0 // pred_check
    _
  $region3: #{tile.13} parent=0 // pred_check_branch
    %3 = sbr.rel (0) target = $region5
  $region4: #{tile.13} parent=0 // pred_region
    _
  $region5: #{tile.13} parent=0 // pred_fallthru
    _
  %v4 = vld [vmem:[%s0] ss:$0 sm:$0xff]
  %5 = vst [vmem:[%s1] sm:$0xff] %v4
  %s6 = scalar_lea.vmem %s1, 8
  %7 = vst [vmem:[%s6] sm:$0xff] %v4

// kernel: tile.14
$region0: #{tile.14}
  %s0 = inlined_call_operand.vmem [shape: f32[16,4], index: 0, kind: input, shape index: {}]
  %s1 = inlined_call_operand.vmem [shape: f32[1,64], index: 1, kind: output, shape index: {}]
  $region1: #{tile.14} parent=0
    #allocation0 [shape = 'u8[4096]{0}', space=vmem, size = 0x1000, scoped, tag = 'scoped mem for output reshape']
    %v2 = vld [vmem:[%s0] sm:$0x1]
    %vm3 = vcmask 31744
    %4 = vst.msk [vmem:[#allocation0] sm:$0x1] %vm3, %v2
    %s5 = scalar_lea.vmem %s0, 15
    %v6 = vld [vmem:[%s5] sm:$0x1]
    %7 = vrot.lane.b32.xlu0 %v6, 60
    %v8 = vpop.permute.xlu0 %7
    %vm9 = vcmask 523744
    %10 = vst.msk [vmem:[#allocation0] sm:$0x1] %vm9, %v8
    %s11 = scalar_lea.vmem %s0, 14
    %v12 = vld [vmem:[%s11] sm:$0x1]
    %13 = vrot.lane.b32.xlu0 %v12, 56
    %v14 = vpop.permute.xlu0 %13
    %vm15 = vcmask 490944
    %16 = vst.msk [vmem:[#allocation0] sm:$0x1] %vm15, %v14
    %s17 = scalar_lea.vmem %s0, 13
    %v18 = vld [vmem:[%s17] sm:$0x1]
    %19 = vrot.lane.b32.xlu0 %v18, 52
    %v20 = vpop.permute.xlu0 %19
    %vm21 = vcmask 458144
    %22 = vst.msk [vmem:[#allocation0] sm:$0x1] %vm21, %v20
    %s23 = scalar_lea.vmem %s0, 12
    %v24 = vld [vmem:[%s23] sm:$0x1]
    %25 = vrot.lane.b32.xlu0 %v24, 48
    %v26 = vpop.permute.xlu0 %25
    %vm27 = vcmask 425344
    %28 = vst.msk [vmem:[#allocation0] sm:$0x1] %vm27, %v26
    %s29 = scalar_lea.vmem %s0, 11
    %v30 = vld [vmem:[%s29] sm:$0x1]
    %31 = vrot.lane.b32.xlu0 %v30, 44
    %v32 = vpop.permute.xlu0 %31
    %vm33 = vcmask 392544
    %34 = vst.msk [vmem:[#allocation0] sm:$0x1] %vm33, %v32
    %s35 = scalar_lea.vmem %s0, 10
    %v36 = vld [vmem:[%s35] sm:$0x1]
    %37 = vrot.lane.b32.xlu0 %v36, 40
    %v38 = vpop.permute.xlu0 %37
    %vm39 = vcmask 359744
    %40 = vst.msk [vmem:[#allocation0] sm:$0x1] %vm39, %v38
    %s41 = scalar_lea.vmem %s0, 9
    %v42 = vld [vmem:[%s41] sm:$0x1]
    %43 = vrot.lane.b32.xlu0 %v42, 36
    %v44 = vpop.permute.xlu0 %43
    %vm45 = vcmask 326944
    %46 = vst.msk [vmem:[#allocation0] sm:$0x1] %vm45, %v44
    %s47 = scalar_lea.vmem %s0, 8
    %v48 = vld [vmem:[%s47] sm:$0x1]
    %49 = vrot.lane.b32.xlu0 %v48, 32
    %v50 = vpop.permute.xlu0 %49
    %vm51 = vcmask 294144
    %52 = vst.msk [vmem:[#allocation0] sm:$0x1] %vm51, %v50
    %s53 = scalar_lea.vmem %s0, 7
    %v54 = vld [vmem:[%s53] sm:$0x1]
    %55 = vrot.lane.b32.xlu0 %v54, 28
    %v56 = vpop.permute.xlu0 %55
    %vm57 = vcmask 261344
    %58 = vst.msk [vmem:[#allocation0] sm:$0x1] %vm57, %v56
    %s59 = scalar_lea.vmem %s0, 6
    %v60 = vld [vmem:[%s59] sm:$0x1]
    %61 = vrot.lane.b32.xlu0 %v60, 24
    %v62 = vpop.permute.xlu0 %61
    %vm63 = vcmask 228544
    %64 = vst.msk [vmem:[#allocation0] sm:$0x1] %vm63, %v62
    %s65 = scalar_lea.vmem %s0, 5
    %v66 = vld [vmem:[%s65] sm:$0x1]
    %67 = vrot.lane.b32.xlu0 %v66, 20
    %v68 = vpop.permute.xlu0 %67
    %vm69 = vcmask 195744
    %70 = vst.msk [vmem:[#allocation0] sm:$0x1] %vm69, %v68
    %s71 = scalar_lea.vmem %s0, 4
    %v72 = vld [vmem:[%s71] sm:$0x1]
    %73 = vrot.lane.b32.xlu0 %v72, 16
    %v74 = vpop.permute.xlu0 %73
    %vm75 = vcmask 162944
    %76 = vst.msk [vmem:[#allocation0] sm:$0x1] %vm75, %v74
    %s77 = scalar_lea.vmem %s0, 3
    %v78 = vld [vmem:[%s77] sm:$0x1]
    %79 = vrot.lane.b32.xlu0 %v78, 12
    %v80 = vpop.permute.xlu0 %79
    %vm81 = vcmask 130144
    %82 = vst.msk [vmem:[#allocation0] sm:$0x1] %vm81, %v80
    %s83 = scalar_lea.vmem %s0, 2
    %v84 = vld [vmem:[%s83] sm:$0x1]
    %85 = vrot.lane.b32.xlu0 %v84, 8
    %v86 = vpop.permute.xlu0 %85
    %vm87 = vcmask 97344
    %88 = vst.msk [vmem:[#allocation0] sm:$0x1] %vm87, %v86
    %s89 = scalar_lea.vmem %s0, 1
    %v90 = vld [vmem:[%s89] sm:$0x1]
    %91 = vrot.lane.b32.xlu0 %v90, 4
    %v92 = vpop.permute.xlu0 %91
    %vm93 = vcmask 64544
    %94 = vst.msk [vmem:[#allocation0] sm:$0x1] %vm93, %v92
    %s96 = sshllo.u32 0, 1
    %v98 = vld [vmem:[#allocation0] sm:%s96]
    %s99 = sshllo.u32 0, 1
    %100 = vst [vmem:[%s1] sm:%s99] %v98

// kernel: resblock_forward.1
$region0: #{resblock_forward.1}
  #allocation0 [shape = 'u32[]', space=smem, size = 0x4, offset = 0x4, fixed_abs, tag = 'smem constant byte address 0x4 - core index']
  #allocation1 [shape = 'u32[144,128]{1,0:T(1,128)}', space=vmem, size = 0x12000, scoped, tag = 'internal scratch']
  #allocation2 [shape = 'f32[18,64]{1,0:T(8,128)}', space=vmem, size = 0x3000, scoped, tag = 'scratch operand']
  #allocation3 [shape = 'f32[18,64]{1,0:T(8,128)}', space=vmem, size = 0x3000, scoped, tag = 'scratch operand']
  %s0 = inlined_call_operand.vmem [shape: f32[2,16,64], index: 0, kind: input, shape index: {}]
  %s1 = inlined_call_operand.vmem [shape: f32[3,64,64], index: 1, kind: input, shape index: {}]
  %s2 = inlined_call_operand.vmem [shape: f32[1,64], index: 2, kind: input, shape index: {}]
  %s3 = inlined_call_operand.vmem [shape: f32[3,64,64], index: 3, kind: input, shape index: {}]
  %s4 = inlined_call_operand.vmem [shape: f32[1,64], index: 4, kind: input, shape index: {}]
  %s5 = inlined_call_operand.vmem [shape: f32[2,16,64], index: 5, kind: output, shape index: {}]
  %s6 = sld [smem:[#allocation0]]
  $region53: #{resblock_forward.1} parent=0
    _
  %s8 = ssub.s32 1, %s6
  %s9 = scalar_select 0, %s8, %s6
  loop: start=0, step=1, limit=4
  $region2: #{resblock_forward.1} parent=0 // loop_pre_header
    _
  $region3: #{resblock_forward.1} parent=0 // loop_header
    %s11 = sphi 0, %s15
    %p12 = scmp.ge.s32.totalorder %s11, 4
    %s21 = sphi 0, %s23
    %s24 = sphi 0, %s21
    %s25 = sphi 0, %s24
    %s41 = sphi 0, %s25
    %s45 = sphi 0, %s45
    %s47 = sphi 0, %s45
    %s48 = sphi 0, %s47
    %s62 = sphi 0, %s48
    %s66 = sphi 0, %s66
    %s68 = sphi 0, %s66
    %s69 = sphi 0, %s68
    %s83 = sphi 0, %s69
    %s87 = sphi 0, %s87
    %s89 = sphi 0, %s87
    %s90 = sphi 0, %s89
    %s104 = sphi 0, %s90
    %s108 = sphi 0, %s108
    %s110 = sphi 0, %s108
    %s111 = sphi 0, %s110
    %s125 = sphi 0, %s111
    %s131 = sphi 0, %s133
    %s134 = sphi 0, %s131
    %s135 = sphi 0, %s134
    %s151 = sphi 0, %s135
  $region4: #{resblock_forward.1} parent=0 // loop_header_branch
    %14 = sbr.rel (%p12) target = $region8
  $region5: #{resblock_forward.1} parent=0 // loop_body
    %s16 = ssub.s32 %s11, 1
    %s17 = ssub.s32 %s11, 2
    %s18 = sadd.s32 %s11, 1
    %s19 = ssub.s32 %s11, %s18
    %p20 = scmp.eq.s32.totalorder %s19, 0
    %s22 = sadd.s32 %s21, 1
    %s23 = scalar_select %p20, %s21, %s22
    %p26 = pneg %p20
    %p27 = scmp.eq.s32.totalorder %s11, 1
    %p28 = por %p26, %p27
    %p29 = scmp.ne.s32.totalorder %s21, %s24
    %p30 = scmp.eq.s32.totalorder %s11, 0
    %p31 = por %p29, %p30
    %p32 = scmp.ne.s32.totalorder %s21, %s24
    %p33 = scmp.eq.s32.totalorder %s16, 1
    %p34 = por %p32, %p33
    %p35 = scmp.ne.s32.totalorder %s24, %s25
    %p36 = scmp.eq.s32.totalorder %s16, 0
    %p37 = por %p35, %p36
    %p38 = scmp.ne.s32.totalorder %s24, %s25
    %p39 = scmp.eq.s32.totalorder %s17, 1
    %p40 = por %p38, %p39
    %p42 = scmp.ne.s32.totalorder %s25, %s41
    %p43 = scmp.eq.s32.totalorder %s17, 0
    %p44 = por %p42, %p43
    %s46 = sadd.s32 %s45, 1
    %p49 = scmp.eq.s32.totalorder %s11, 1
    %p50 = scmp.ne.s32.totalorder %s45, %s47
    %p51 = scmp.eq.s32.totalorder %s11, 0
    %p52 = por %p50, %p51
    %p53 = scmp.ne.s32.totalorder %s45, %s47
    %p54 = scmp.eq.s32.totalorder %s16, 1
    %p55 = por %p53, %p54
    %p56 = scmp.ne.s32.totalorder %s47, %s48
    %p57 = scmp.eq.s32.totalorder %s16, 0
    %p58 = por %p56, %p57
    %p59 = scmp.ne.s32.totalorder %s47, %s48
    %p60 = scmp.eq.s32.totalorder %s17, 1
    %p61 = por %p59, %p60
    %p63 = scmp.ne.s32.totalorder %s48, %s62
    %p64 = scmp.eq.s32.totalorder %s17, 0
    %p65 = por %p63, %p64
    %s67 = sadd.s32 %s66, 1
    %p70 = scmp.eq.s32.totalorder %s11, 1
    %p71 = scmp.ne.s32.totalorder %s66, %s68
    %p72 = scmp.eq.s32.totalorder %s11, 0
    %p73 = por %p71, %p72
    %p74 = scmp.ne.s32.totalorder %s66, %s68
    %p75 = scmp.eq.s32.totalorder %s16, 1
    %p76 = por %p74, %p75
    %p77 = scmp.ne.s32.totalorder %s68, %s69
    %p78 = scmp.eq.s32.totalorder %s16, 0
    %p79 = por %p77, %p78
    %p80 = scmp.ne.s32.totalorder %s68, %s69
    %p81 = scmp.eq.s32.totalorder %s17, 1
    %p82 = por %p80, %p81
    %p84 = scmp.ne.s32.totalorder %s69, %s83
    %p85 = scmp.eq.s32.totalorder %s17, 0
    %p86 = por %p84, %p85
    %s88 = sadd.s32 %s87, 1
    %p91 = scmp.eq.s32.totalorder %s11, 1
    %p92 = scmp.ne.s32.totalorder %s87, %s89
    %p93 = scmp.eq.s32.totalorder %s11, 0
    %p94 = por %p92, %p93
    %p95 = scmp.ne.s32.totalorder %s87, %s89
    %p96 = scmp.eq.s32.totalorder %s16, 1
    %p97 = por %p95, %p96
    %p98 = scmp.ne.s32.totalorder %s89, %s90
    %p99 = scmp.eq.s32.totalorder %s16, 0
    %p100 = por %p98, %p99
    %p101 = scmp.ne.s32.totalorder %s89, %s90
    %p102 = scmp.eq.s32.totalorder %s17, 1
    %p103 = por %p101, %p102
    %p105 = scmp.ne.s32.totalorder %s90, %s104
    %p106 = scmp.eq.s32.totalorder %s17, 0
    %p107 = por %p105, %p106
    %s109 = sadd.s32 %s108, 1
    %p112 = scmp.eq.s32.totalorder %s11, 1
    %p113 = scmp.ne.s32.totalorder %s108, %s110
    %p114 = scmp.eq.s32.totalorder %s11, 0
    %p115 = por %p113, %p114
    %p116 = scmp.ne.s32.totalorder %s108, %s110
    %p117 = scmp.eq.s32.totalorder %s16, 1
    %p118 = por %p116, %p117
    %p119 = scmp.ne.s32.totalorder %s110, %s111
    %p120 = scmp.eq.s32.totalorder %s16, 0
    %p121 = por %p119, %p120
    %p122 = scmp.ne.s32.totalorder %s110, %s111
    %p123 = scmp.eq.s32.totalorder %s17, 1
    %p124 = por %p122, %p123
    %p126 = scmp.ne.s32.totalorder %s111, %s125
    %p127 = scmp.eq.s32.totalorder %s17, 0
    %p128 = por %p126, %p127
    %s129 = ssub.s32 %s11, %s18
    %p130 = scmp.eq.s32.totalorder %s129, 0
    %s132 = sadd.s32 %s131, 1
    %s133 = scalar_select %p130, %s131, %s132
    %p136 = pneg %p130
    %p137 = scmp.eq.s32.totalorder %s11, 1
    %p138 = por %p136, %p137
    %p139 = scmp.ne.s32.totalorder %s131, %s134
    %p140 = scmp.eq.s32.totalorder %s11, 0
    %p141 = por %p139, %p140
    %p142 = scmp.ne.s32.totalorder %s131, %s134
    %p143 = scmp.eq.s32.totalorder %s16, 1
    %p144 = por %p142, %p143
    %p145 = scmp.ne.s32.totalorder %s134, %s135
    %p146 = scmp.eq.s32.totalorder %s16, 0
    %p147 = por %p145, %p146
    %p148 = scmp.ne.s32.totalorder %s134, %s135
    %p149 = scmp.eq.s32.totalorder %s17, 1
    %p150 = por %p148, %p149
    %p152 = scmp.ne.s32.totalorder %s135, %s151
    %p153 = scmp.eq.s32.totalorder %s17, 0
    %p154 = por %p152, %p153
    %p155 = scmp.le.s32.totalorder 1, %s11
    %p156 = scmp.lt.s32.totalorder %s11, 3
    %p157 = pnand %p155, %p156
    %p158 = pneg %p157
    // Predicated region
    $region9: #{resblock_forward.1} parent=5 // pred_check
      _
    $region10: #{resblock_forward.1} parent=5 // pred_check_branch
      %160 = sbr.rel (%p157) target = $region12
    $region11: #{resblock_forward.1} parent=5 // pred_region
      %s161 = ssub.s32 %s11, 1
      // Predicated region
      $region13: #{resblock_forward.1} parent=11 // pred_check
        %p162 = pneg %p58
      $region14: #{resblock_forward.1} parent=11 // pred_check_branch
        %164 = sbr.rel (%p162) target = $region16
      $region15: #{resblock_forward.1} parent=11 // pred_region
        _
      $region16: #{resblock_forward.1} parent=11 // pred_fallthru
        _
      // Predicated region
      $region17: #{resblock_forward.1} parent=11 // pred_check
        %p165 = pneg %p79
      $region18: #{resblock_forward.1} parent=11 // pred_check_branch
        %167 = sbr.rel (%p165) target = $region20
      $region19: #{resblock_forward.1} parent=11 // pred_region
        _
      $region20: #{resblock_forward.1} parent=11 // pred_fallthru
        _
      // Predicated region
      $region21: #{resblock_forward.1} parent=11 // pred_check
        %p168 = pneg %p100
      $region22: #{resblock_forward.1} parent=11 // pred_check_branch
        %170 = sbr.rel (%p168) target = $region24
      $region23: #{resblock_forward.1} parent=11 // pred_region
        _
      $region24: #{resblock_forward.1} parent=11 // pred_fallthru
        _
      // Predicated region
      $region25: #{resblock_forward.1} parent=11 // pred_check
        %p171 = pneg %p121
      $region26: #{resblock_forward.1} parent=11 // pred_check_branch
        %173 = sbr.rel (%p171) target = $region28
      $region27: #{resblock_forward.1} parent=11 // pred_region
        _
      $region28: #{resblock_forward.1} parent=11 // pred_fallthru
        _
    $region12: #{resblock_forward.1} parent=5 // pred_fallthru
      _
    %p174 = scmp.lt.s32.totalorder %s11, 2
    // Predicated region
    $region29: #{resblock_forward.1} parent=5 // pred_check
      %p175 = pneg %p174
    $region30: #{resblock_forward.1} parent=5 // pred_check_branch
      %177 = sbr.rel (%p175) target = $region32
    $region31: #{resblock_forward.1} parent=5 // pred_region
      // Predicated region
      $region33: #{resblock_forward.1} parent=31 // pred_check
        %p178 = pneg %p31
      $region34: #{resblock_forward.1} parent=31 // pred_check_branch
        %180 = sbr.rel (%p178) target = $region36
      $region35: #{resblock_forward.1} parent=31 // pred_region
        %p181 = scmp.lt.s32.totalorder %s11, 1
        %s182 = scalar_select %p181, %s11, 1
        %s183 = smul.addr %s182, 2
        %s184 = smul.addr %s183, 8
        %s185 = scalar_lea.vmem %s0, %s184
      $region36: #{resblock_forward.1} parent=31 // pred_fallthru
        _
    $region32: #{resblock_forward.1} parent=5 // pred_fallthru
      _
    %p186 = scmp.le.s32.totalorder 1, %s11
    %p187 = scmp.lt.s32.totalorder %s11, 3
    %p188 = pnand %p186, %p187
    %p189 = pneg %p188
    // Predicated region
    $region37: #{resblock_forward.1} parent=5 // pred_check
      _
    $region38: #{resblock_forward.1} parent=5 // pred_check_branch
      %191 = sbr.rel (%p188) target = $region40
    $region39: #{resblock_forward.1} parent=5 // pred_region
      %s192 = ssub.s32 %s11, 1
      %p193 = scmp.lt.s32.totalorder %s16, 1
      %s194 = scalar_select %p193, %s16, 1
      %s195 = smul.addr %s194, 2
      %s196 = smul.addr %s195, 8
      %s197 = scalar_lea.vmem %s0, %s196
      %p198 = pneg %p37
      %p199 = pneg %p34
      %p200 = pneg %p58
      %p201 = pneg %p55
      %p202 = pneg %p79
      %p203 = pneg %p76
      %p204 = pneg %p100
      %p205 = pneg %p97
      %p206 = pneg %p121
      %p207 = pneg %p118
      %p208 = pneg %p147
      %p209 = pneg %p144
      %p210 = scmp.lt.s32.totalorder %s16, 1
      %s211 = scalar_select %p210, %s16, 1
      %s212 = smul.addr %s211, 2
      %s213 = smul.addr %s212, 8
      %s214 = scalar_lea.vmem %s5, %s213
      %p215 = scmp.lt.s32.totalorder %s16, 1
      %s216 = scalar_select %p215, %s16, 1
      %s217 = smul.addr %s216, 2
      %s218 = smul.addr %s217, 8
      %s219 = scalar_lea.vmem %s0, %s218
      %p220 = scmp.lt.s32.totalorder %s16, 1
      %s221 = scalar_select %p220, %s16, 1
      %s222 = smul.addr %s221, 2
      %s223 = smul.addr %s222, 8
      %s224 = scalar_lea.vmem %s5, %s223
      %v225 = vld [vmem:[%s219] sm:$0xff]
      %v226 = vld [vmem:[%s219 + $0x8] sm:$0xff]
      %vm227 = vcmask 516096
      %228 = vst.msk [vmem:[#allocation2] sm:$0x1] %vm227, 0.0
      %229 = vst.msk [vmem:[#allocation2 + $0x11] sm:$0x1] %vm227, 0.0
      %v230 = vmax.f32 %v225, 0.0
      %v231 = vmax.f32 %v226, 0.0
      %vm232 = vcmask 523264
      %233 = vst.msk [vmem:[#allocation2 + $0x1] sm:$0xff] %vm232, %v230
      %234 = vst.msk [vmem:[#allocation2 + $0x9] sm:$0xff] %vm232, %v231
      %v235 = vld [vmem:[#allocation2] sm:$0xff]
      %v236 = vld [vmem:[#allocation2 + $0x8] sm:$0xff]
      %v237 = vld [vmem:[%s1] sm:$0xff]
      %v238 = vld [vmem:[%s1 + $0x8] sm:$0xff]
      %v239 = vld [vmem:[%s1 + $0x10] sm:$0xff]
      %v240 = vld [vmem:[%s1 + $0x18] sm:$0xff]
      %v241 = vld [vmem:[%s1 + $0x20] sm:$0xff]
      %v242 = vld [vmem:[%s1 + $0x28] sm:$0xff]
      %v243 = vld [vmem:[%s1 + $0x30] sm:$0xff]
      %v244 = vld [vmem:[%s1 + $0x38] sm:$0xff]
      %v245 = vld [vmem:[#allocation2 + $0x1] sm:$0xff]
      %v246 = vld [vmem:[#allocation2 + $0x9] sm:$0xff]
      %s247 = scalar_lea.vmem %s1, 64
      %v248 = vld [vmem:[%s247] sm:$0xff]
      %v249 = vld [vmem:[%s247 + $0x8] sm:$0xff]
      %v250 = vld [vmem:[%s247 + $0x10] sm:$0xff]
      %v251 = vld [vmem:[%s247 + $0x18] sm:$0xff]
      %v252 = vld [vmem:[%s247 + $0x20] sm:$0xff]
      %v253 = vld [vmem:[%s247 + $0x28] sm:$0xff]
      %v254 = vld [vmem:[%s247 + $0x30] sm:$0xff]
      %v255 = vld [vmem:[%s247 + $0x38] sm:$0xff]
      %v257 = vsel %vm232, %v245, 0
      %v260 = vsel %vm232, %v246, 0
      %262 = vmatprep.subr.mxu0 0.0
      %263 = vmatpush1.msra.mxu0 %v248
      %264 = vmatprep.subr.mxu0 0.0
      %265 = vmatpush1.msra.mxu0 %v249
      %266 = vmatprep.subr.mxu0 0.0
      %267 = vmatpush1.msra.mxu0 %v250
      %268 = vmatprep.subr.mxu0 0.0
      %269 = vmatpush1.msra.mxu0 %v251
      %270 = vmatprep.subr.mxu0 0.0
      %271 = vmatpush1.msra.mxu0 %v252
      %272 = vmatprep.subr.mxu0 0.0
      %273 = vmatpush1.msra.mxu0 %v253
      %274 = vmatprep.subr.mxu0 0.0
      %275 = vmatpush1.msra.mxu0 %v254
      %276 = vmatprep.subr.mxu0 0.0
      %277 = vmatpush1.msra.mxu0 %v255
      %278 = vmatprep.subr.mxu0 0.0
      %279 = vmatpush1.msra.mxu0 0.0
      %280 = vmatprep.subr.mxu0 0.0
      %281 = vmatpush1.msra.mxu0 0.0
      %282 = vmatprep.subr.mxu0 0.0
      %283 = vmatpush1.msra.mxu0 0.0
      %284 = vmatprep.subr.mxu0 0.0
      %285 = vmatpush1.msra.mxu0 0.0
      %286 = vmatprep.subr.mxu0 0.0
      %287 = vmatpush1.msra.mxu0 0.0
      %288 = vmatprep.subr.mxu0 0.0
      %289 = vmatpush1.msra.mxu0 0.0
      %290 = vmatprep.subr.mxu0 0.0
      %291 = vmatpush1.msra.mxu0 0.0
      %292 = vmatprep.subr.mxu0 0.0
      %293 = vmatpush1.msra.mxu0 0.0
      %294 = vmatprep.subr.mxu0 0.0
      %295 = vmatpush1.msra.mxu0 0.0
      %296 = vmatprep.subr.mxu0 0.0
      %297 = vmatpush1.msra.mxu0 0.0
      %298 = vmatprep.subr.mxu0 0.0
      %299 = vmatpush1.msra.mxu0 0.0
      %300 = vmatprep.subr.mxu0 0.0
      %301 = vmatpush1.msra.mxu0 0.0
      %302 = vmatprep.subr.mxu0 0.0
      %303 = vmatpush1.msra.mxu0 0.0
      %304 = vmatprep.subr.mxu0 0.0
      %305 = vmatpush1.msra.mxu0 0.0
      %306 = vmatprep.subr.mxu0 0.0
      %307 = vmatpush1.msra.mxu0 0.0
      %308 = vmatprep.subr.mxu0 0.0
      %309 = vmatpush1.msra.mxu0 0.0
      %310 = vmatprep.subr.mxu0 0.0
      %311 = vmatpush1.msra.mxu0 0.0
      %312 = vmatprep.subr.mxu0 0.0
      %313 = vmatpush1.msra.mxu0 0.0
      %314 = vmatprep.subr.mxu0 0.0
      %315 = vmatpush1.msra.mxu0 0.0
      %316 = vmatprep.subr.mxu0 0.0
      %317 = vmatpush1.msra.mxu0 0.0
      %318 = vmatprep.subr.mxu0 0.0
      %319 = vmatpush1.msra.mxu0 0.0
      %320 = vmatprep.subr.mxu0 0.0
      %321 = vmatpush1.msra.mxu0 0.0
      %322 = vmatprep.subr.mxu0 0.0
      %323 = vmatpush1.msra.mxu0 0.0
      %324 = vmatprep.subr.mxu0 0.0
      %325 = vmatpush1.msra.mxu0 0.0
      %326 = vmatprep.mubr.f32.mxu0 0.0
      %327 = vmatmul.mubr.f32.gmra.mrb[0].mxu0 %v257
      %v328 = vpop.f32.mrb[0].mxu0
      %v329 = vadd.f32 0.0, %v328
      %v330 = vpop.f32.mrb[0].mxu0
      %331 = vmatprep.mubr.f32.mxu0 0.0
      %332 = vmatmul.mubr.f32.gmra.mrb[0].mxu0 %v260
      %v333 = vpop.f32.mrb[0].mxu0
      %v334 = vadd.f32 0.0, %v333
      %v335 = vpop.f32.mrb[0].mxu0
      %336 = vdwg.mxu0
      %v338 = vsel %vm232, %v235, 0
      %v341 = vsel %vm232, %v236, 0
      %343 = vmatprep.subr.mxu0 0.0
      %344 = vmatpush1.msra.mxu0 %v237
      %345 = vmatprep.subr.mxu0 0.0
      %346 = vmatpush1.msra.mxu0 %v238
      %347 = vmatprep.subr.mxu0 0.0
      %348 = vmatpush1.msra.mxu0 %v239
      %349 = vmatprep.subr.mxu0 0.0
      %350 = vmatpush1.msra.mxu0 %v240
      %351 = vmatprep.subr.mxu0 0.0
      %352 = vmatpush1.msra.mxu0 %v241
      %353 = vmatprep.subr.mxu0 0.0
      %354 = vmatpush1.msra.mxu0 %v242
      %355 = vmatprep.subr.mxu0 0.0
      %356 = vmatpush1.msra.mxu0 %v243
      %357 = vmatprep.subr.mxu0 0.0
      %358 = vmatpush1.msra.mxu0 %v244
      %359 = vmatprep.subr.mxu0 0.0
      %360 = vmatpush1.msra.mxu0 0.0
      %361 = vmatprep.subr.mxu0 0.0
      %362 = vmatpush1.msra.mxu0 0.0
      %363 = vmatprep.subr.mxu0 0.0
      %364 = vmatpush1.msra.mxu0 0.0
      %365 = vmatprep.subr.mxu0 0.0
      %366 = vmatpush1.msra.mxu0 0.0
      %367 = vmatprep.subr.mxu0 0.0
      %368 = vmatpush1.msra.mxu0 0.0
      %369 = vmatprep.subr.mxu0 0.0
      %370 = vmatpush1.msra.mxu0 0.0
      %371 = vmatprep.subr.mxu0 0.0
      %372 = vmatpush1.msra.mxu0 0.0
      %373 = vmatprep.subr.mxu0 0.0
      %374 = vmatpush1.msra.mxu0 0.0
      %375 = vmatprep.subr.mxu0 0.0
      %376 = vmatpush1.msra.mxu0 0.0
      %377 = vmatprep.subr.mxu0 0.0
      %378 = vmatpush1.msra.mxu0 0.0
      %379 = vmatprep.subr.mxu0 0.0
      %380 = vmatpush1.msra.mxu0 0.0
      %381 = vmatprep.subr.mxu0 0.0
      %382 = vmatpush1.msra.mxu0 0.0
      %383 = vmatprep.subr.mxu0 0.0
      %384 = vmatpush1.msra.mxu0 0.0
      %385 = vmatprep.subr.mxu0 0.0
      %386 = vmatpush1.msra.mxu0 0.0
      %387 = vmatprep.subr.mxu0 0.0
      %388 = vmatpush1.msra.mxu0 0.0
      %389 = vmatprep.subr.mxu0 0.0
      %390 = vmatpush1.msra.mxu0 0.0
      %391 = vmatprep.subr.mxu0 0.0
      %392 = vmatpush1.msra.mxu0 0.0
      %393 = vmatprep.subr.mxu0 0.0
      %394 = vmatpush1.msra.mxu0 0.0
      %395 = vmatprep.subr.mxu0 0.0
      %396 = vmatpush1.msra.mxu0 0.0
      %397 = vmatprep.subr.mxu0 0.0
      %398 = vmatpush1.msra.mxu0 0.0
      %399 = vmatprep.subr.mxu0 0.0
      %400 = vmatpush1.msra.mxu0 0.0
      %401 = vmatprep.subr.mxu0 0.0
      %402 = vmatpush1.msra.mxu0 0.0
      %403 = vmatprep.subr.mxu0 0.0
      %404 = vmatpush1.msra.mxu0 0.0
      %405 = vmatprep.subr.mxu0 0.0
      %406 = vmatpush1.msra.mxu0 0.0
      %407 = vmatprep.mubr.f32.mxu0 0.0
      %408 = vmatmul.mubr.f32.gmra.mrb[0].mxu0 %v338
      %v409 = vpop.f32.mrb[0].mxu0
      %v410 = vadd.f32 %v329, %v409
      %v411 = vpop.f32.mrb[0].mxu0
      %412 = vmatprep.mubr.f32.mxu0 0.0
      %413 = vmatmul.mubr.f32.gmra.mrb[0].mxu0 %v341
      %v414 = vpop.f32.mrb[0].mxu0
      %v415 = vadd.f32 %v334, %v414
      %v416 = vpop.f32.mrb[0].mxu0
      %417 = vdwg.mxu0
      %v418 = vld [vmem:[#allocation2 + $0x2] sm:$0xff]
      %v419 = vld [vmem:[#allocation2 + $0xa] sm:$0xff]
      %s420 = scalar_lea.vmem %s1, 128
      %v421 = vld [vmem:[%s420] sm:$0xff]
      %v422 = vld [vmem:[%s420 + $0x8] sm:$0xff]
      %v423 = vld [vmem:[%s420 + $0x10] sm:$0xff]
      %v424 = vld [vmem:[%s420 + $0x18] sm:$0xff]
      %v425 = vld [vmem:[%s420 + $0x20] sm:$0xff]
      %v426 = vld [vmem:[%s420 + $0x28] sm:$0xff]
      %v427 = vld [vmem:[%s420 + $0x30] sm:$0xff]
      %v428 = vld [vmem:[%s420 + $0x38] sm:$0xff]
      %v430 = vsel %vm232, %v418, 0
      %v433 = vsel %vm232, %v419, 0
      %435 = vmatprep.subr.mxu0 0.0
      %436 = vmatpush1.msra.mxu0 %v421
      %437 = vmatprep.subr.mxu0 0.0
      %438 = vmatpush1.msra.mxu0 %v422
      %439 = vmatprep.subr.mxu0 0.0
      %440 = vmatpush1.msra.mxu0 %v423
      %441 = vmatprep.subr.mxu0 0.0
      %442 = vmatpush1.msra.mxu0 %v424
      %443 = vmatprep.subr.mxu0 0.0
      %444 = vmatpush1.msra.mxu0 %v425
      %445 = vmatprep.subr.mxu0 0.0
      %446 = vmatpush1.msra.mxu0 %v426
      %447 = vmatprep.subr.mxu0 0.0
      %448 = vmatpush1.msra.mxu0 %v427
      %449 = vmatprep.subr.mxu0 0.0
      %450 = vmatpush1.msra.mxu0 %v428
      %451 = vmatprep.subr.mxu0 0.0
      %452 = vmatpush1.msra.mxu0 0.0
      %453 = vmatprep.subr.mxu0 0.0
      %454 = vmatpush1.msra.mxu0 0.0
      %455 = vmatprep.subr.mxu0 0.0
      %456 = vmatpush1.msra.mxu0 0.0
      %457 = vmatprep.subr.mxu0 0.0
      %458 = vmatpush1.msra.mxu0 0.0
      %459 = vmatprep.subr.mxu0 0.0
      %460 = vmatpush1.msra.mxu0 0.0
      %461 = vmatprep.subr.mxu0 0.0
      %462 = vmatpush1.msra.mxu0 0.0
      %463 = vmatprep.subr.mxu0 0.0
      %464 = vmatpush1.msra.mxu0 0.0
      %465 = vmatprep.subr.mxu0 0.0
      %466 = vmatpush1.msra.mxu0 0.0
      %467 = vmatprep.subr.mxu0 0.0
      %468 = vmatpush1.msra.mxu0 0.0
      %469 = vmatprep.subr.mxu0 0.0
      %470 = vmatpush1.msra.mxu0 0.0
      %471 = vmatprep.subr.mxu0 0.0
      %472 = vmatpush1.msra.mxu0 0.0
      %473 = vmatprep.subr.mxu0 0.0
      %474 = vmatpush1.msra.mxu0 0.0
      %475 = vmatprep.subr.mxu0 0.0
      %476 = vmatpush1.msra.mxu0 0.0
      %477 = vmatprep.subr.mxu0 0.0
      %478 = vmatpush1.msra.mxu0 0.0
      %479 = vmatprep.subr.mxu0 0.0
      %480 = vmatpush1.msra.mxu0 0.0
      %481 = vmatprep.subr.mxu0 0.0
      %482 = vmatpush1.msra.mxu0 0.0
      %483 = vmatprep.subr.mxu0 0.0
      %484 = vmatpush1.msra.mxu0 0.0
      %485 = vmatprep.subr.mxu0 0.0
      %486 = vmatpush1.msra.mxu0 0.0
      %487 = vmatprep.subr.mxu0 0.0
      %488 = vmatpush1.msra.mxu0 0.0
      %489 = vmatprep.subr.mxu0 0.0
      %490 = vmatpush1.msra.mxu0 0.0
      %491 = vmatprep.subr.mxu0 0.0
      %492 = vmatpush1.msra.mxu0 0.0
      %493 = vmatprep.subr.mxu0 0.0
      %494 = vmatpush1.msra.mxu0 0.0
      %495 = vmatprep.subr.mxu0 0.0
      %496 = vmatpush1.msra.mxu0 0.0
      %497 = vmatprep.subr.mxu0 0.0
      %498 = vmatpush1.msra.mxu0 0.0
      %499 = vmatprep.mubr.f32.mxu0 0.0
      %500 = vmatmul.mubr.f32.gmra.mrb[0].mxu0 %v430
      %v501 = vpop.f32.mrb[0].mxu0
      %v502 = vadd.f32 0.0, %v501
      %v503 = vpop.f32.mrb[0].mxu0
      %504 = vmatprep.mubr.f32.mxu0 0.0
      %505 = vmatmul.mubr.f32.gmra.mrb[0].mxu0 %v433
      %v506 = vpop.f32.mrb[0].mxu0
      %v507 = vadd.f32 0.0, %v506
      %v508 = vpop.f32.mrb[0].mxu0
      %509 = vdwg.mxu0
      %v510 = vadd.f32 %v410, %v502
      %v511 = vadd.f32 %v415, %v507
      %v512 = vld [vmem:[%s2] sm:$0x1]
      %v514 = vlaneseq
      %v515 = vshrl.u32 %v514, 7
      %v516 = vsub.s32 0, %v515
      %v517 = vrot.slane %v512, %v516
      %v519 = vadd.f32 %v510, %v517
      %v520 = vadd.f32 %v511, %v517
      %521 = vst.msk [vmem:[#allocation3] sm:$0x1] %vm227, 0.0
      %522 = vst.msk [vmem:[#allocation3 + $0x11] sm:$0x1] %vm227, 0.0
      %v523 = vmax.f32 %v519, 0.0
      %v524 = vmax.f32 %v520, 0.0
      %525 = vst.msk [vmem:[#allocation3 + $0x1] sm:$0xff] %vm232, %v523
      %526 = vst.msk [vmem:[#allocation3 + $0x9] sm:$0xff] %vm232, %v524
      %v527 = vld [vmem:[#allocation3] sm:$0xff]
      %v528 = vld [vmem:[#allocation3 + $0x8] sm:$0xff]
      %v529 = vld [vmem:[%s3] sm:$0xff]
      %v530 = vld [vmem:[%s3 + $0x8] sm:$0xff]
      %v531 = vld [vmem:[%s3 + $0x10] sm:$0xff]
      %v532 = vld [vmem:[%s3 + $0x18] sm:$0xff]
      %v533 = vld [vmem:[%s3 + $0x20] sm:$0xff]
      %v534 = vld [vmem:[%s3 + $0x28] sm:$0xff]
      %v535 = vld [vmem:[%s3 + $0x30] sm:$0xff]
      %v536 = vld [vmem:[%s3 + $0x38] sm:$0xff]
      %v537 = vld [vmem:[#allocation3 + $0x1] sm:$0xff]
      %v538 = vld [vmem:[#allocation3 + $0x9] sm:$0xff]
      %s539 = scalar_lea.vmem %s3, 64
      %v540 = vld [vmem:[%s539] sm:$0xff]
      %v541 = vld [vmem:[%s539 + $0x8] sm:$0xff]
      %v542 = vld [vmem:[%s539 + $0x10] sm:$0xff]
      %v543 = vld [vmem:[%s539 + $0x18] sm:$0xff]
      %v544 = vld [vmem:[%s539 + $0x20] sm:$0xff]
      %v545 = vld [vmem:[%s539 + $0x28] sm:$0xff]
      %v546 = vld [vmem:[%s539 + $0x30] sm:$0xff]
      %v547 = vld [vmem:[%s539 + $0x38] sm:$0xff]
      %v549 = vsel %vm232, %v537, 0
      %v552 = vsel %vm232, %v538, 0
      %554 = vmatprep.subr.mxu0 0.0
      %555 = vmatpush1.msra.mxu0 %v540
      %556 = vmatprep.subr.mxu0 0.0
      %557 = vmatpush1.msra.mxu0 %v541
      %558 = vmatprep.subr.mxu0 0.0
      %559 = vmatpush1.msra.mxu0 %v542
      %560 = vmatprep.subr.mxu0 0.0
      %561 = vmatpush1.msra.mxu0 %v543
      %562 = vmatprep.subr.mxu0 0.0
      %563 = vmatpush1.msra.mxu0 %v544
      %564 = vmatprep.subr.mxu0 0.0
      %565 = vmatpush1.msra.mxu0 %v545
      %566 = vmatprep.subr.mxu0 0.0
      %567 = vmatpush1.msra.mxu0 %v546
      %568 = vmatprep.subr.mxu0 0.0
      %569 = vmatpush1.msra.mxu0 %v547
      %570 = vmatprep.subr.mxu0 0.0
      %571 = vmatpush1.msra.mxu0 0.0
      %572 = vmatprep.subr.mxu0 0.0
      %573 = vmatpush1.msra.mxu0 0.0
      %574 = vmatprep.subr.mxu0 0.0
      %575 = vmatpush1.msra.mxu0 0.0
      %576 = vmatprep.subr.mxu0 0.0
      %577 = vmatpush1.msra.mxu0 0.0
      %578 = vmatprep.subr.mxu0 0.0
      %579 = vmatpush1.msra.mxu0 0.0
      %580 = vmatprep.subr.mxu0 0.0
      %581 = vmatpush1.msra.mxu0 0.0
      %582 = vmatprep.subr.mxu0 0.0
      %583 = vmatpush1.msra.mxu0 0.0
      %584 = vmatprep.subr.mxu0 0.0
      %585 = vmatpush1.msra.mxu0 0.0
      %586 = vmatprep.subr.mxu0 0.0
      %587 = vmatpush1.msra.mxu0 0.0
      %588 = vmatprep.subr.mxu0 0.0
      %589 = vmatpush1.msra.mxu0 0.0
      %590 = vmatprep.subr.mxu0 0.0
      %591 = vmatpush1.msra.mxu0 0.0
      %592 = vmatprep.subr.mxu0 0.0
      %593 = vmatpush1.msra.mxu0 0.0
      %594 = vmatprep.subr.mxu0 0.0
      %595 = vmatpush1.msra.mxu0 0.0
      %596 = vmatprep.subr.mxu0 0.0
      %597 = vmatpush1.msra.mxu0 0.0
      %598 = vmatprep.subr.mxu0 0.0
      %599 = vmatpush1.msra.mxu0 0.0
      %600 = vmatprep.subr.mxu0 0.0
      %601 = vmatpush1.msra.mxu0 0.0
      %602 = vmatprep.subr.mxu0 0.0
      %603 = vmatpush1.msra.mxu0 0.0
      %604 = vmatprep.subr.mxu0 0.0
      %605 = vmatpush1.msra.mxu0 0.0
      %606 = vmatprep.subr.mxu0 0.0
      %607 = vmatpush1.msra.mxu0 0.0
      %608 = vmatprep.subr.mxu0 0.0
      %609 = vmatpush1.msra.mxu0 0.0
      %610 = vmatprep.subr.mxu0 0.0
      %611 = vmatpush1.msra.mxu0 0.0
      %612 = vmatprep.subr.mxu0 0.0
      %613 = vmatpush1.msra.mxu0 0.0
      %614 = vmatprep.subr.mxu0 0.0
      %615 = vmatpush1.msra.mxu0 0.0
      %616 = vmatprep.subr.mxu0 0.0
      %617 = vmatpush1.msra.mxu0 0.0
      %618 = vmatprep.mubr.f32.mxu0 0.0
      %619 = vmatmul.mubr.f32.gmra.mrb[0].mxu0 %v549
      %v620 = vpop.f32.mrb[0].mxu0
      %v621 = vadd.f32 0.0, %v620
      %v622 = vpop.f32.mrb[0].mxu0
      %623 = vmatprep.mubr.f32.mxu0 0.0
      %624 = vmatmul.mubr.f32.gmra.mrb[0].mxu0 %v552
      %v625 = vpop.f32.mrb[0].mxu0
      %v626 = vadd.f32 0.0, %v625
      %v627 = vpop.f32.mrb[0].mxu0
      %628 = vdwg.mxu0
      %v630 = vsel %vm232, %v527, 0
      %v633 = vsel %vm232, %v528, 0
      %635 = vmatprep.subr.mxu0 0.0
      %636 = vmatpush1.msra.mxu0 %v529
      %637 = vmatprep.subr.mxu0 0.0
      %638 = vmatpush1.msra.mxu0 %v530
      %639 = vmatprep.subr.mxu0 0.0
      %640 = vmatpush1.msra.mxu0 %v531
      %641 = vmatprep.subr.mxu0 0.0
      %642 = vmatpush1.msra.mxu0 %v532
      %643 = vmatprep.subr.mxu0 0.0
      %644 = vmatpush1.msra.mxu0 %v533
      %645 = vmatprep.subr.mxu0 0.0
      %646 = vmatpush1.msra.mxu0 %v534
      %647 = vmatprep.subr.mxu0 0.0
      %648 = vmatpush1.msra.mxu0 %v535
      %649 = vmatprep.subr.mxu0 0.0
      %650 = vmatpush1.msra.mxu0 %v536
      %651 = vmatprep.subr.mxu0 0.0
      %652 = vmatpush1.msra.mxu0 0.0
      %653 = vmatprep.subr.mxu0 0.0
      %654 = vmatpush1.msra.mxu0 0.0
      %655 = vmatprep.subr.mxu0 0.0
      %656 = vmatpush1.msra.mxu0 0.0
      %657 = vmatprep.subr.mxu0 0.0
      %658 = vmatpush1.msra.mxu0 0.0
      %659 = vmatprep.subr.mxu0 0.0
      %660 = vmatpush1.msra.mxu0 0.0
      %661 = vmatprep.subr.mxu0 0.0
      %662 = vmatpush1.msra.mxu0 0.0
      %663 = vmatprep.subr.mxu0 0.0
      %664 = vmatpush1.msra.mxu0 0.0
      %665 = vmatprep.subr.mxu0 0.0
      %666 = vmatpush1.msra.mxu0 0.0
      %667 = vmatprep.subr.mxu0 0.0
      %668 = vmatpush1.msra.mxu0 0.0
      %669 = vmatprep.subr.mxu0 0.0
      %670 = vmatpush1.msra.mxu0 0.0
      %671 = vmatprep.subr.mxu0 0.0
      %672 = vmatpush1.msra.mxu0 0.0
      %673 = vmatprep.subr.mxu0 0.0
      %674 = vmatpush1.msra.mxu0 0.0
      %675 = vmatprep.subr.mxu0 0.0
      %676 = vmatpush1.msra.mxu0 0.0
      %677 = vmatprep.subr.mxu0 0.0
      %678 = vmatpush1.msra.mxu0 0.0
      %679 = vmatprep.subr.mxu0 0.0
      %680 = vmatpush1.msra.mxu0 0.0
      %681 = vmatprep.subr.mxu0 0.0
      %682 = vmatpush1.msra.mxu0 0.0
      %683 = vmatprep.subr.mxu0 0.0
      %684 = vmatpush1.msra.mxu0 0.0
      %685 = vmatprep.subr.mxu0 0.0
      %686 = vmatpush1.msra.mxu0 0.0
      %687 = vmatprep.subr.mxu0 0.0
      %688 = vmatpush1.msra.mxu0 0.0
      %689 = vmatprep.subr.mxu0 0.0
      %690 = vmatpush1.msra.mxu0 0.0
      %691 = vmatprep.subr.mxu0 0.0
      %692 = vmatpush1.msra.mxu0 0.0
      %693 = vmatprep.subr.mxu0 0.0
      %694 = vmatpush1.msra.mxu0 0.0
      %695 = vmatprep.subr.mxu0 0.0
      %696 = vmatpush1.msra.mxu0 0.0
      %697 = vmatprep.subr.mxu0 0.0
      %698 = vmatpush1.msra.mxu0 0.0
      %699 = vmatprep.mubr.f32.mxu0 0.0
      %700 = vmatmul.mubr.f32.gmra.mrb[0].mxu0 %v630
      %v701 = vpop.f32.mrb[0].mxu0
      %v702 = vadd.f32 %v621, %v701
      %v703 = vpop.f32.mrb[0].mxu0
      %704 = vmatprep.mubr.f32.mxu0 0.0
      %705 = vmatmul.mubr.f32.gmra.mrb[0].mxu0 %v633
      %v706 = vpop.f32.mrb[0].mxu0
      %v707 = vadd.f32 %v626, %v706
      %v708 = vpop.f32.mrb[0].mxu0
      %709 = vdwg.mxu0
      %v710 = vld [vmem:[#allocation3 + $0x2] sm:$0xff]
      %v711 = vld [vmem:[#allocation3 + $0xa] sm:$0xff]
      %s712 = scalar_lea.vmem %s3, 128
      %v713 = vld [vmem:[%s712] sm:$0xff]
      %v714 = vld [vmem:[%s712 + $0x8] sm:$0xff]
      %v715 = vld [vmem:[%s712 + $0x10] sm:$0xff]
      %v716 = vld [vmem:[%s712 + $0x18] sm:$0xff]
      %v717 = vld [vmem:[%s712 + $0x20] sm:$0xff]
      %v718 = vld [vmem:[%s712 + $0x28] sm:$0xff]
      %v719 = vld [vmem:[%s712 + $0x30] sm:$0xff]
      %v720 = vld [vmem:[%s712 + $0x38] sm:$0xff]
      %v722 = vsel %vm232, %v710, 0
      %v725 = vsel %vm232, %v711, 0
      %727 = vmatprep.subr.mxu0 0.0
      %728 = vmatpush1.msra.mxu0 %v713
      %729 = vmatprep.subr.mxu0 0.0
      %730 = vmatpush1.msra.mxu0 %v714
      %731 = vmatprep.subr.mxu0 0.0
      %732 = vmatpush1.msra.mxu0 %v715
      %733 = vmatprep.subr.mxu0 0.0
      %734 = vmatpush1.msra.mxu0 %v716
      %735 = vmatprep.subr.mxu0 0.0
      %736 = vmatpush1.msra.mxu0 %v717
      %737 = vmatprep.subr.mxu0 0.0
      %738 = vmatpush1.msra.mxu0 %v718
      %739 = vmatprep.subr.mxu0 0.0
      %740 = vmatpush1.msra.mxu0 %v719
      %741 = vmatprep.subr.mxu0 0.0
      %742 = vmatpush1.msra.mxu0 %v720
      %743 = vmatprep.subr.mxu0 0.0
      %744 = vmatpush1.msra.mxu0 0.0
      %745 = vmatprep.subr.mxu0 0.0
      %746 = vmatpush1.msra.mxu0 0.0
      %747 = vmatprep.subr.mxu0 0.0
      %748 = vmatpush1.msra.mxu0 0.0
      %749 = vmatprep.subr.mxu0 0.0
      %750 = vmatpush1.msra.mxu0 0.0
      %751 = vmatprep.subr.mxu0 0.0
      %752 = vmatpush1.msra.mxu0 0.0
      %753 = vmatprep.subr.mxu0 0.0
      %754 = vmatpush1.msra.mxu0 0.0
      %755 = vmatprep.subr.mxu0 0.0
      %756 = vmatpush1.msra.mxu0 0.0
      %757 = vmatprep.subr.mxu0 0.0
      %758 = vmatpush1.msra.mxu0 0.0
      %759 = vmatprep.subr.mxu0 0.0
      %760 = vmatpush1.msra.mxu0 0.0
      %761 = vmatprep.subr.mxu0 0.0
      %762 = vmatpush1.msra.mxu0 0.0
      %763 = vmatprep.subr.mxu0 0.0
      %764 = vmatpush1.msra.mxu0 0.0
      %765 = vmatprep.subr.mxu0 0.0
      %766 = vmatpush1.msra.mxu0 0.0
      %767 = vmatprep.subr.mxu0 0.0
      %768 = vmatpush1.msra.mxu0 0.0
      %769 = vmatprep.subr.mxu0 0.0
      %770 = vmatpush1.msra.mxu0 0.0
      %771 = vmatprep.subr.mxu0 0.0
      %772 = vmatpush1.msra.mxu0 0.0
      %773 = vmatprep.subr.mxu0 0.0
      %774 = vmatpush1.msra.mxu0 0.0
      %775 = vmatprep.subr.mxu0 0.0
      %776 = vmatpush1.msra.mxu0 0.0
      %777 = vmatprep.subr.mxu0 0.0
      %778 = vmatpush1.msra.mxu0 0.0
      %779 = vmatprep.subr.mxu0 0.0
      %780 = vmatpush1.msra.mxu0 0.0
      %781 = vmatprep.subr.mxu0 0.0
      %782 = vmatpush1.msra.mxu0 0.0
      %783 = vmatprep.subr.mxu0 0.0
      %784 = vmatpush1.msra.mxu0 0.0
      %785 = vmatprep.subr.mxu0 0.0
      %786 = vmatpush1.msra.mxu0 0.0
      %787 = vmatprep.subr.mxu0 0.0
      %788 = vmatpush1.msra.mxu0 0.0
      %789 = vmatprep.subr.mxu0 0.0
      %790 = vmatpush1.msra.mxu0 0.0
      %791 = vmatprep.mubr.f32.mxu0 0.0
      %792 = vmatmul.mubr.f32.gmra.mrb[0].mxu0 %v722
      %v793 = vpop.f32.mrb[0].mxu0
      %v794 = vadd.f32 0.0, %v793
      %v795 = vpop.f32.mrb[0].mxu0
      %796 = vmatprep.mubr.f32.mxu0 0.0
      %797 = vmatmul.mubr.f32.gmra.mrb[0].mxu0 %v725
      %v798 = vpop.f32.mrb[0].mxu0
      %v799 = vadd.f32 0.0, %v798
      %v800 = vpop.f32.mrb[0].mxu0
      %801 = vdwg.mxu0
      %v802 = vadd.f32 %v702, %v794
      %v803 = vadd.f32 %v707, %v799
      %v804 = vld [vmem:[%s4] sm:$0x1]
      %v806 = vlaneseq
      %v807 = vshrl.u32 %v806, 7
      %v808 = vsub.s32 0, %v807
      %v809 = vrot.slane %v804, %v808
      %v811 = vadd.f32 %v802, %v809
      %v812 = vadd.f32 %v803, %v809
      %v813 = vadd.f32 %v811, %v225
      %v814 = vadd.f32 %v812, %v226
      %815 = vst.msk [vmem:[%s224] sm:$0xff] %vm232, %v813
      %816 = vst.msk [vmem:[%s224 + $0x8] sm:$0xff] %vm232, %v814
      %p817 = scmp.lt.s32.totalorder %s16, 1
      %s818 = scalar_select %p817, %s16, 1
      %s819 = smul.addr %s818, 2
      %s820 = smul.addr %s819, 8
      %s821 = scalar_lea.vmem %s5, %s820
      // Predicated region
      $region41: #{resblock_forward.1} parent=39 // pred_check
        %p822 = pneg %p144
      $region42: #{resblock_forward.1} parent=39 // pred_check_branch
        %824 = sbr.rel (%p822) target = $region44
      $region43: #{resblock_forward.1} parent=39 // pred_region
        _
      $region44: #{resblock_forward.1} parent=39 // pred_fallthru
        _
    $region40: #{resblock_forward.1} parent=5 // pred_fallthru
      _
    %p825 = scmp.le.s32.totalorder 2, %s11
    // Predicated region
    $region45: #{resblock_forward.1} parent=5 // pred_check
      %p826 = pneg %p825
    $region46: #{resblock_forward.1} parent=5 // pred_check_branch
      %828 = sbr.rel (%p826) target = $region48
    $region47: #{resblock_forward.1} parent=5 // pred_region
      %s829 = ssub.s32 %s11, 2
      // Predicated region
      $region49: #{resblock_forward.1} parent=47 // pred_check
        %p830 = pneg %p150
      $region50: #{resblock_forward.1} parent=47 // pred_check_branch
        %832 = sbr.rel (%p830) target = $region52
      $region51: #{resblock_forward.1} parent=47 // pred_region
        %p833 = scmp.lt.s32.totalorder %s17, 1
        %s834 = scalar_select %p833, %s17, 1
        %s835 = smul.addr %s834, 2
        %s836 = smul.addr %s835, 8
        %s837 = scalar_lea.vmem %s5, %s836
      $region52: #{resblock_forward.1} parent=47 // pred_fallthru
        _
    $region48: #{resblock_forward.1} parent=5 // pred_fallthru
      _
  $region6: #{resblock_forward.1} parent=0 // loop_footer
    %s15 = sadd.s32 1, %s11
  $region7: #{resblock_forward.1} parent=0 // loop_footer_branch
    %10 = sbr.rel target = $region3
  $region8: #{resblock_forward.1} parent=0 // loop_exit
    _

</llo_original>
